<compile_context>
chip_gen: v5e
topology: v5e:2x2
jax: 0.10.0
libtpu: 0.0.40
codegen_flags: <defaults>
</compile_context>

<pallas_src>
import functools

import jax
import jax.numpy as jnp
from jax.experimental import pallas as pl
from jax.experimental.pallas import tpu as pltpu

_LANE = 128
_SUBLANE = 8
_CHUNK = _SUBLANE * _LANE  # 1024 elements: one (8, 128) f32 tile

# Device kinds with two TensorCores per JAX device (megacore). Single-TC
# chips (v5e / v6e, "lite" kinds) must NOT match.
_TWO_CORE_MARKERS = ("v4", "v5p", "7x", "v7")


def _detect_num_tensorcores():
    """Best-effort TensorCores-per-device detection; conservative default 1."""
    try:
        kind = jax.devices()[0].device_kind.lower()
    except Exception:
        return 1
    if "lite" in kind or "v5e" in kind or "v6e" in kind:
        return 1
    if any(m in kind for m in _TWO_CORE_MARKERS):
        return 2
    return 1


def _mse_partial_kernel(pred_ref, true_ref, out_ref, *,
                        row_tile, tiles_per_core, valid_rows):
    c = pl.program_id(0)   # TensorCore-split axis (CORE_PARALLEL when 2 TCs)
    t = pl.program_id(1)   # row-tile reduction axis ("arbitrary")

    # Output block is resident across t (its index_map ignores t): accumulate
    # directly into it; zero-init on the first reduction step.
    @pl.when(t == 0)
    def _():
        out_ref[...] = jnp.zeros_like(out_ref)

    # Upcast in-kernel (keeps HBM traffic narrow for bf16 inputs).
    diff = pred_ref[...].astype(jnp.float32) - true_ref[...].astype(jnp.float32)
    sq = diff * diff

    # Un-clamped global row-block index; tile_start in rows.
    rb = c * tiles_per_core + t
    tile_start = rb * row_tile
    is_full_tile = (tile_start + row_tile) <= valid_rows

    # Fast path: interior tiles need no mask at all (no iota/compare/select
    # filler competing with the HBM-bound stream).
    @pl.when(is_full_tile)
    def _():
        out_ref[...] += jnp.sum(sq, axis=0, keepdims=True)

    # Slow path: the boundary tile (partially out-of-bounds rows read garbage)
    # and any clamped duplicate tile from an uneven two-core split.
    @pl.when(jnp.logical_not(is_full_tile))
    def _():
        row_ids = tile_start + jax.lax.broadcasted_iota(jnp.int32, sq.shape, 0)
        masked = jnp.where(row_ids < valid_rows, sq, 0.0)
        out_ref[...] += jnp.sum(masked, axis=0, keepdims=True)


def simple_box_loss(pred_boxes, true_boxes, *, row_tile=8192,
                    xla_fallback_elems=65536, num_cores=None):
    """MSE loss (mean over all elements), matching nn.MSELoss(reduction='mean')."""
    assert pred_boxes.shape == true_boxes.shape
    n = pred_boxes.size  # static

    # Small-input fast path: fixed pallas_call launch overhead dominates for
    # tiny box tensors; a fused XLA reduce is strictly faster there.
    if n < xla_fallback_elems:
        d = pred_boxes.astype(jnp.float32) - true_boxes.astype(jnp.float32)
        return jnp.mean(d * d)

    p = pred_boxes.reshape(-1)   # free row-major flatten
    t = true_boxes.reshape(-1)

    n_main = (n // _CHUNK) * _CHUNK
    tail_sum = jnp.float32(0.0)
    if n_main == 0:
        # Tiny input: pad up to one chunk; zeros in BOTH inputs -> diff 0.
        p_main = jnp.pad(p, (0, _CHUNK - n))
        t_main = jnp.pad(t, (0, _CHUNK - n))
        n_main = _CHUNK
    elif n_main < n:
        # Ragged tail (<1024 elems): tiny XLA reduce; the kernel only streams
        # the chunk-aligned prefix (no zero-padded copy of the full arrays).
        dt = p[n_main:].astype(jnp.float32) - t[n_main:].astype(jnp.float32)
        tail_sum = jnp.sum(dt * dt)
        p_main = p[:n_main]
        t_main = t[:n_main]
    else:
        p_main, t_main = p, t   # fully aligned: zero wrapper-side copies

    rows = n_main // _LANE                 # multiple of 8
    p2 = p_main.reshape(rows, _LANE)
    t2 = t_main.reshape(rows, _LANE)

    # Row tiling: default 8192 rows -> 4 MiB f32 per input block; double
    # buffered x 2 inputs = 16 MiB, amortizes per-step overhead on all chips.
    tr = min(row_tile, rows)
    tr = max(_SUBLANE, (tr // _SUBLANE) * _SUBLANE)
    n_tiles = pl.cdiv(rows, tr)

    if num_cores is None:
        num_cores = _detect_num_tensorcores()
    n_cores = 2 if (num_cores >= 2 and n_tiles >= 2) else 1
    tiles_per_core = pl.cdiv(n_tiles, n_cores)

    def in_map(c, tt):
        # Clamp so duplicated (fully masked) tiles never index past the array.
        return (jnp.minimum(c * tiles_per_core + tt, n_tiles - 1), 0)

    kernel = functools.partial(
        _mse_partial_kernel,
        row_tile=tr,
        tiles_per_core=tiles_per_core,
        valid_rows=rows,
    )

    leading_sem = pltpu.CORE_PARALLEL if n_cores == 2 else pltpu.ARBITRARY
    itemsize = jnp.dtype(pred_boxes.dtype).itemsize

    partials = pl.pallas_call(
        kernel,
        out_shape=jax.ShapeDtypeStruct((n_cores, _LANE), jnp.float32),
        grid_spec=pltpu.PrefetchScalarGridSpec(
            num_scalar_prefetch=0,
            grid=(n_cores, tiles_per_core),
            in_specs=[
                pl.BlockSpec((tr, _LANE), in_map),
                pl.BlockSpec((tr, _LANE), in_map),
            ],
            out_specs=pl.BlockSpec((1, _LANE), lambda c, tt: (c, 0)),
        ),
        compiler_params=pltpu.CompilerParams(
            dimension_semantics=(leading_sem, pltpu.ARBITRARY),
            vmem_limit_bytes=48 * 1024 * 1024,
        ),
        cost_estimate=pl.CostEstimate(
            flops=3 * n_main,
            transcendentals=0,
            bytes_accessed=2 * n_main * itemsize + 4 * _LANE * n_cores,
        ),
    )(p2, t2)

    # Mean over the true element count (padding / masked rows contributed 0).
    return ((jnp.sum(partials) + tail_sum) / jnp.float32(n)).astype(jnp.float32)


if __name__ == "__main__":
    key = jax.random.PRNGKey(0)
    k1, k2, k3, k4, k5, k6 = jax.random.split(key, 6)

    # Case 1: tiny, forward-consistent shape (batch=2, num_boxes=8, 4 coords).
    # xla_fallback_elems=0 forces the kernel path so the demo exercises it.
    pred1 = jax.random.uniform(k1, (2, 8, 4), dtype=jnp.float32)
    true1 = jax.random.uniform(k2, (2, 8, 4), dtype=jnp.float32)
    loss1 = simple_box_loss(pred1, true1, xla_fallback_elems=0)
    jax.block_until_ready(loss1)
    ref1 = jnp.mean((pred1 - true1) ** 2)
    assert jnp.allclose(loss1, ref1, rtol=1e-5, atol=1e-6), (loss1, ref1)

    # Case 2: ragged size (3200 elems) with a small row tile to exercise the
    # aligned-prefix kernel + XLA tail, multi-tile reduction, boundary mask,
    # and (on 2-TC chips) the CORE_PARALLEL split with a clamped tile.
    pred2 = jax.random.uniform(k3, (2, 400, 4), dtype=jnp.float32)
    true2 = jax.random.uniform(k4, (2, 400, 4), dtype=jnp.float32)
    loss2 = simple_box_loss(pred2, true2, row_tile=16, xla_fallback_elems=0)
    jax.block_until_ready(loss2)
    ref2 = jnp.mean((pred2 - true2) ** 2)
    assert jnp.allclose(loss2, ref2, rtol=1e-5, atol=1e-6), (loss2, ref2)

    # Case 3: chunk-aligned size, default large tile -> pure streaming path
    # with no pad, no slice, and no in-kernel masking.
    pred3 = jax.random.uniform(k5, (4, 4096, 4), dtype=jnp.float32)
    true3 = jax.random.uniform(k6, (4, 4096, 4), dtype=jnp.float32)
    loss3 = simple_box_loss(pred3, true3, xla_fallback_elems=0)
    jax.block_until_ready(loss3)
    ref3 = jnp.mean((pred3 - true3) ** 2)
    assert jnp.allclose(loss3, ref3, rtol=1e-5, atol=1e-6), (loss3, ref3)

    print("KERNEL_OK")
</pallas_src>

<mosaic_0001>
module attributes {stable_mosaic.version = 11 : i64} {
  func.func @_mse_partial_kernel(%arg0: i32, %arg1: i32, %arg2: memref<8x128xf32, #tpu.memory_space<vmem>>, %arg3: memref<8x128xf32, #tpu.memory_space<vmem>>, %arg4: memref<1x128xf32, #tpu.memory_space<vmem>>) attributes {dimension_semantics = [#tpu.dimension_semantics<arbitrary>, #tpu.dimension_semantics<arbitrary>], iteration_bounds = array<i64: 1, 1>, scalar_prefetch = 0 : i64, scratch_operands = 0 : i64, tpu.core_type = #tpu.core_type<tc>, window_params = [{transform_indices = @transform_0, window_bounds = array<i64: 8, 128>}, {transform_indices = @transform_1, window_bounds = array<i64: 8, 128>}, {transform_indices = @transform_2, window_bounds = array<i64: 1, 128>}]} {
    %c0_i32 = arith.constant 0 : i32
    %0 = arith.cmpi eq, %arg1, %c0_i32 : i32
    %1 = arith.extui %0 : i1 to i32
    %c0_i32_0 = arith.constant 0 : i32
    %2 = arith.cmpi ne, %1, %c0_i32_0 : i32
    scf.if %2 {
      %cst = arith.constant 0.000000e+00 : f32
      %17 = vector.broadcast %cst : f32 to vector<1x128xf32>
      %c0_8 = arith.constant 0 : index
      %c0_9 = arith.constant 0 : index
      %18 = vector.load %arg4[%c0_8, %c0_9] : memref<1x128xf32, #tpu.memory_space<vmem>>, vector<1x128xf32>
      tpu.vector_store %arg4[%c0_8, %c0_9], %17 {strides = array<i32>} : memref<1x128xf32, #tpu.memory_space<vmem>>, vector<1x128xf32>,
    } else {
    }
    %c0 = arith.constant 0 : index
    %c0_1 = arith.constant 0 : index
    %3 = vector.load %arg2[%c0, %c0_1] : memref<8x128xf32, #tpu.memory_space<vmem>>, vector<8x128xf32>
    %c0_2 = arith.constant 0 : index
    %c0_3 = arith.constant 0 : index
    %4 = vector.load %arg3[%c0_2, %c0_3] : memref<8x128xf32, #tpu.memory_space<vmem>>, vector<8x128xf32>
    %5 = arith.subf %3, %4 : vector<8x128xf32>
    %6 = arith.mulf %5, %5 : vector<8x128xf32>
    %c1_i32 = arith.constant 1 : i32
    %7 = arith.muli %arg0, %c1_i32 : i32
    %8 = arith.addi %7, %arg1 : i32
    %c8_i32 = arith.constant 8 : i32
    %9 = arith.muli %8, %c8_i32 : i32
    %c8_i32_4 = arith.constant 8 : i32
    %10 = arith.addi %9, %c8_i32_4 : i32
    %c8_i32_5 = arith.constant 8 : i32
    %11 = arith.cmpi sle, %10, %c8_i32_5 : i32
    %12 = arith.extui %11 : i1 to i32
    %c0_i32_6 = arith.constant 0 : i32
    %13 = arith.cmpi ne, %12, %c0_i32_6 : i32
    scf.if %13 {
      %c0_8 = arith.constant 0 : index
      %c0_9 = arith.constant 0 : index
      %17 = vector.load %arg4[%c0_8, %c0_9] : memref<1x128xf32, #tpu.memory_space<vmem>>, vector<1x128xf32>
      %cst = arith.constant dense<0.000000e+00> : vector<128xf32>
      %18 = vector.multi_reduction <add>, %6, %cst [0] : vector<8x128xf32> to vector<128xf32>
      %19 = vector.shape_cast %18 : vector<128xf32> to vector<1x128xf32>
      %20 = arith.addf %17, %19 : vector<1x128xf32>
      %c0_10 = arith.constant 0 : index
      %c0_11 = arith.constant 0 : index
      %21 = vector.load %arg4[%c0_10, %c0_11] : memref<1x128xf32, #tpu.memory_space<vmem>>, vector<1x128xf32>
      tpu.vector_store %arg4[%c0_10, %c0_11], %20 {strides = array<i32>} : memref<1x128xf32, #tpu.memory_space<vmem>>, vector<1x128xf32>,
    } else {
    }
    %true = arith.constant true
    %14 = arith.xori %11, %true : i1
    %15 = arith.extui %14 : i1 to i32
    %c0_i32_7 = arith.constant 0 : i32
    %16 = arith.cmpi ne, %15, %c0_i32_7 : i32
    scf.if %16 {
      %17 = tpu.iota {dimensions = array<i32: 0>} : vector<8x128xi32>
      %18 = vector.broadcast %9 : i32 to vector<8x128xi32>
      %19 = arith.addi %18, %17 : vector<8x128xi32>
      %c8_i32_8 = arith.constant 8 : i32
      %20 = vector.broadcast %c8_i32_8 : i32 to vector<8x128xi32>
      %21 = arith.cmpi slt, %19, %20 : vector<8x128xi32>
      %cst = arith.constant 0.000000e+00 : f32
      %22 = vector.broadcast %cst : f32 to vector<8x128xf32>
      %23 = arith.select %21, %6, %22 : vector<8x128xi1>, vector<8x128xf32>
      %c0_9 = arith.constant 0 : index
      %c0_10 = arith.constant 0 : index
      %24 = vector.load %arg4[%c0_9, %c0_10] : memref<1x128xf32, #tpu.memory_space<vmem>>, vector<1x128xf32>
      %cst_11 = arith.constant dense<0.000000e+00> : vector<128xf32>
      %25 = vector.multi_reduction <add>, %23, %cst_11 [0] : vector<8x128xf32> to vector<128xf32>
      %26 = vector.shape_cast %25 : vector<128xf32> to vector<1x128xf32>
      %27 = arith.addf %24, %26 : vector<1x128xf32>
      %c0_12 = arith.constant 0 : index
      %c0_13 = arith.constant 0 : index
      %28 = vector.load %arg4[%c0_12, %c0_13] : memref<1x128xf32, #tpu.memory_space<vmem>>, vector<1x128xf32>
      tpu.vector_store %arg4[%c0_12, %c0_13], %27 {strides = array<i32>} : memref<1x128xf32, #tpu.memory_space<vmem>>, vector<1x128xf32>,
    } else {
    }
    return
  }
  func.func @transform_0(%arg0: i32, %arg1: i32) -> (i32, i32) {
    %c1_i32 = arith.constant 1 : i32
    %0 = arith.muli %arg0, %c1_i32 : i32
    %1 = arith.addi %0, %arg1 : i32
    %c0_i32 = arith.constant 0 : i32
    %2 = arith.minsi %1, %c0_i32 : i32
    %c0_i32_0 = arith.constant 0 : i32
    %c0_i32_1 = arith.constant 0 : i32
    return %2, %c0_i32_0 : i32, i32
  }
  func.func @transform_1(%arg0: i32, %arg1: i32) -> (i32, i32) {
    %c1_i32 = arith.constant 1 : i32
    %0 = arith.muli %arg0, %c1_i32 : i32
    %1 = arith.addi %0, %arg1 : i32
    %c0_i32 = arith.constant 0 : i32
    %2 = arith.minsi %1, %c0_i32 : i32
    %c0_i32_0 = arith.constant 0 : i32
    %c0_i32_1 = arith.constant 0 : i32
    return %2, %c0_i32_0 : i32, i32
  }
  func.func @transform_2(%arg0: i32, %arg1: i32) -> (i32, i32) {
    %c0_i32 = arith.constant 0 : i32
    %c0_i32_0 = arith.constant 0 : i32
    return %arg0, %c0_i32 : i32, i32
  }
}

</mosaic_0001>

<llo_original>
// kernel: tpu_custom_call.1
$region0: #{tpu_custom_call.1}
  #allocation0 [shape = 'u32[]', space=smem, size = 0x4, offset = 0x4, fixed_abs, tag = 'smem constant byte address 0x4 - core index']
  #allocation1 [shape = 'u32[72,128]{1,0:T(1,128)}', space=vmem, size = 0x9000, scoped, tag = 'internal scratch']
  %s0 = inlined_call_operand.hbm [shape: f32[8,128], index: 0, kind: input, shape index: {}]
  %s1 = inlined_call_operand.hbm [shape: f32[8,128], index: 1, kind: input, shape index: {}]
  %s2 = inlined_call_operand.hbm [shape: f32[1,128], index: 2, kind: output, shape index: {}]
  %s3 = sld [smem:[#allocation0]]
  $region38: #{tpu_custom_call.1} parent=0
    _
  %s5 = ssub.s32 1, %s3
  %s6 = scalar_select 0, %s5, %s3
  $region1: #{tpu_custom_call.1} parent=0
    #allocation2 [shape = 'u8[4096]{0}', space=vmem, size = 0x1000, scoped, tag = 'input window, operand 0, single buffered']
    #allocation3 [shape = 's32[1]{0}', space=sflag, size = 0x4, scoped, tag = 'scoped memory for tpu_custom_call.1']
    #allocation4 [shape = 's32[1]{0}', space=sflag, size = 0x4, scoped, tag = 'scoped memory for tpu_custom_call.1']
    #allocation5 [shape = 'u8[4096]{0}', space=vmem, size = 0x1000, scoped, tag = 'input window, operand 1, single buffered']
    #allocation6 [shape = 's32[1]{0}', space=sflag, size = 0x4, scoped, tag = 'scoped memory for tpu_custom_call.1']
    #allocation7 [shape = 'u8[512]{0}', space=vmem, size = 0x400, scoped, tag = 'output window, operand 0, single buffered']
    %7 = vsyncpa [#allocation3], 0
    %8 = vsyncpa [#allocation6], 0
    %9 = vsyncpa [#allocation4], 0
    // Predicated region
    $region2: #{tpu_custom_call.1} parent=1 // pred_check
      _
    $region3: #{tpu_custom_call.1} parent=1 // pred_check_branch
      %11 = sbr.rel (0) target = $region5
    $region4: #{tpu_custom_call.1} parent=1 // pred_region
      %s12 = sadd.s32 0, 0
      %p13 = scmp.lt.s32.totalorder %s12, 0
      %s14 = scalar_select %p13, %s12, 0
      %16 = vsyncadd [#allocation3], 0
      %s17 = smul.addr %s14, 8
      %s18 = scalar_lea.hbm %s0, %s17
      %s20 = sshll.u32 %s18, 4
      %s21 = int_to_ptr.hbm [resolvable:$true] %s20
      %s22 = sshll.u32 [#allocation2], 4
      %s23 = int_to_ptr.vmem [resolvable:$true] %s22
      %25 = dma.hbm_to_vmem [thread:$0]  %s21, 128, %s23, [#allocation3]
    $region5: #{tpu_custom_call.1} parent=1 // pred_fallthru
      _
    // Predicated region
    $region6: #{tpu_custom_call.1} parent=1 // pred_check
      _
    $region7: #{tpu_custom_call.1} parent=1 // pred_check_branch
      %27 = sbr.rel (0) target = $region9
    $region8: #{tpu_custom_call.1} parent=1 // pred_region
      %s28 = sadd.s32 0, 0
      %p29 = scmp.lt.s32.totalorder %s28, 0
      %s30 = scalar_select %p29, %s28, 0
      %32 = vsyncadd [#allocation6], 0
      %s33 = smul.addr %s30, 8
      %s34 = scalar_lea.hbm %s1, %s33
      %s36 = sshll.u32 %s34, 4
      %s37 = int_to_ptr.hbm [resolvable:$true] %s36
      %s38 = sshll.u32 [#allocation5], 4
      %s39 = int_to_ptr.vmem [resolvable:$true] %s38
      %41 = dma.hbm_to_vmem [thread:$0]  %s37, 128, %s39, [#allocation6]
    $region9: #{tpu_custom_call.1} parent=1 // pred_fallthru
      _
    // Predicated region
    $region10: #{tpu_custom_call.1} parent=1 // pred_check
      _
    $region11: #{tpu_custom_call.1} parent=1 // pred_check_branch
      %43 = sbr.rel (0) target = $region13
    $region12: #{tpu_custom_call.1} parent=1 // pred_region
      %45 = dma.done [#allocation3], 128
    $region13: #{tpu_custom_call.1} parent=1 // pred_fallthru
      _
    // Predicated region
    $region14: #{tpu_custom_call.1} parent=1 // pred_check
      _
    $region15: #{tpu_custom_call.1} parent=1 // pred_check_branch
      %47 = sbr.rel (0) target = $region17
    $region16: #{tpu_custom_call.1} parent=1 // pred_region
      %49 = dma.done [#allocation6], 128
    $region17: #{tpu_custom_call.1} parent=1 // pred_fallthru
      _
    %s50 = sadd.s32 0, 0
    %p51 = scmp.lt.s32.totalorder %s50, 0
    %s52 = scalar_select %p51, %s50, 0
    %s53 = sadd.s32 0, 0
    %p54 = scmp.lt.s32.totalorder %s53, 0
    %s55 = scalar_select %p54, %s53, 0
    %p56 = scmp.eq.s32.totalorder 0, 0
    // Predicated region
    $region18: #{tpu_custom_call.1} parent=1 // pred_check
      %p57 = pneg %p56
    $region19: #{tpu_custom_call.1} parent=1 // pred_check_branch
      %59 = sbr.rel (%p57) target = $region21
    $region20: #{tpu_custom_call.1} parent=1 // pred_region
      %60 = vst [vmem:[#allocation7] sm:$0x1] 0.0
    $region21: #{tpu_custom_call.1} parent=1 // pred_fallthru
      _
    %v61 = vld [vmem:[#allocation2] sm:$0xff]
    %v62 = vld [vmem:[#allocation5] sm:$0xff]
    %v63 = vsub.f32 %v61, %v62
    %v64 = vmul.f32 %v63, %v63
    %s65 = sadd.s32 0, 0
    %s66 = smul.u32 %s65, 8
    %s67 = sadd.s32 %s66, 8
    %p68 = scmp.le.s32.totalorder %s67, 8
    // Predicated region
    $region22: #{tpu_custom_call.1} parent=1 // pred_check
      %p69 = pneg %p68
    $region23: #{tpu_custom_call.1} parent=1 // pred_check_branch
      %71 = sbr.rel (%p69) target = $region25
    $region24: #{tpu_custom_call.1} parent=1 // pred_region
      %v72 = vld [vmem:[#allocation7] sm:$0x1]
      %v73 = vrot.slane %v64, 4
      %v74 = vadd.f32 %v64, %v73
      %v75 = vrot.slane %v74, 2
      %v76 = vadd.f32 %v74, %v75
      %v77 = vrot.slane %v76, 1
      %v78 = vadd.f32 %v76, %v77
      %v79 = vadd.f32 %v72, %v78
      %80 = vst [vmem:[#allocation7] sm:$0x1] %v79
    $region25: #{tpu_custom_call.1} parent=1 // pred_fallthru
      _
    %p81 = scmp.gt.s32.totalorder %s67, 8
    // Predicated region
    $region26: #{tpu_custom_call.1} parent=1 // pred_check
      %p82 = pneg %p81
    $region27: #{tpu_custom_call.1} parent=1 // pred_check_branch
      %84 = sbr.rel (%p82) target = $region29
    $region28: #{tpu_custom_call.1} parent=1 // pred_region
      %v85 = vlaneseq
      %v86 = vshrl.u32 %v85, 7
      %v87 = vstv %s66
      %v88 = vadd.s32 %v87, %v86
      %vm89 = vcmp.lt.s32.totalorder %v88, 8
      %v90 = vsel %vm89, %v64, 0.0
      %v91 = vld [vmem:[#allocation7] sm:$0x1]
      %v92 = vrot.slane %v90, 4
      %v93 = vadd.f32 %v90, %v92
      %v94 = vrot.slane %v93, 2
      %v95 = vadd.f32 %v93, %v94
      %v96 = vrot.slane %v95, 1
      %v97 = vadd.f32 %v95, %v96
      %v98 = vadd.f32 %v91, %v97
      %99 = vst [vmem:[#allocation7] sm:$0x1] %v98
    $region29: #{tpu_custom_call.1} parent=1 // pred_fallthru
      _
    // Predicated region
    $region30: #{tpu_custom_call.1} parent=1 // pred_check
      _
    $region31: #{tpu_custom_call.1} parent=1 // pred_check_branch
      %101 = sbr.rel (0) target = $region33
    $region32: #{tpu_custom_call.1} parent=1 // pred_region
      %103 = vsyncadd [#allocation4], 0
      %s105 = sshll.u32 [#allocation7], 4
      %s106 = int_to_ptr.vmem [resolvable:$true] %s105
      %s107 = sshll.u32 %s2, 4
      %s108 = int_to_ptr.hbm [resolvable:$true] %s107
      %110 = dma.vmem_to_hbm [thread:$0]  %s106, 16, %s108, [#allocation4]
    $region33: #{tpu_custom_call.1} parent=1 // pred_fallthru
      _
    // Predicated region
    $region34: #{tpu_custom_call.1} parent=1 // pred_check
      _
    $region35: #{tpu_custom_call.1} parent=1 // pred_check_branch
      %112 = sbr.rel (0) target = $region37
    $region36: #{tpu_custom_call.1} parent=1 // pred_region
      %114 = dma.done [#allocation4], 16
    $region37: #{tpu_custom_call.1} parent=1 // pred_fallthru
      _
    %115 = vsyncpa [#allocation3], 1
    %116 = vsyncpa [#allocation6], 1
    %117 = vsyncpa [#allocation4], 1

</llo_original>
